<compile_context>
chip_gen: v6e
topology: v6e:2x2x1
jax: 0.10.0
libtpu: 0.0.40
codegen_flags: <defaults>
</compile_context>

<pallas_src>
import jax
import jax.numpy as jnp
from jax import lax
from jax.experimental import pallas as pl
from jax.experimental.pallas import tpu as pltpu


def _onehot_gather_kernel(y_ref, code_ref, o_ref):
    """y_ref:   (tb, 1) int32 labels for this batch tile (VMEM).
    code_ref:   (C, D) codebook, constant block index -> VMEM resident.
    o_ref:      (tb, D) output tile.
    """
    tb = o_ref.shape[0]
    num_classes = code_ref.shape[0]

    labels = y_ref[...]                                            # (tb, 1) i32
    classes = lax.broadcasted_iota(jnp.int32, (tb, num_classes), 1)
    # f32/bf16 one-hot (never int): v7x MXU has no integer datapath.
    onehot = (labels == classes).astype(code_ref.dtype)            # (tb, C)
    # HIGHEST precision keeps the f32 row selection bit-exact on the MXU.
    o_ref[...] = jnp.dot(
        onehot, code_ref[...],
        precision=lax.Precision.HIGHEST,
        preferred_element_type=jnp.float32,
    ).astype(o_ref.dtype)


def _pick_batch_tile(batch, latent_dim, itemsize, vmem_tile_budget=6 << 20):
    """Batch tile (multiple of 8) and an even (>=2) number of grid steps."""
    lane_cols = 128 * pl.cdiv(latent_dim, 128)       # VMEM lane granularity
    row_bytes = 128 * 4 + lane_cols * itemsize       # label row + output row in VMEM
    tb = max(8, (vmem_tile_budget // row_bytes) // 8 * 8)
    # Keep >= 2 grid steps so the batch axis can shard across TensorCores.
    tb = min(tb, max(8, ((batch + 15) // 16) * 8))
    n_tiles = pl.cdiv(batch, tb)
    if n_tiles % 2:                                   # even steps -> v7x 2-TC split
        n_tiles += 1
        tb = max(8, 8 * pl.cdiv(pl.cdiv(batch, n_tiles), 8))
        n_tiles = pl.cdiv(batch, tb)
        if n_tiles % 2:
            n_tiles += 1
    return int(tb), int(n_tiles)


def random_code_forward(y, codebook, *, min_rows_for_pallas=128):
    """Pallas equivalent of RandomCode.forward: codebook[y].

    y:        (B,)   integer class labels in [0, num_classes)
    codebook: (C, D) row-normalized prototypes (frozen, used as-is: no per-call pad)
    returns:  (B, D) gathered prototype rows
    """
    batch = y.shape[0]
    num_classes, latent_dim = codebook.shape
    y = y.astype(jnp.int32)

    itemsize = jnp.dtype(codebook.dtype).itemsize
    lane_cols = 128 * pl.cdiv(latent_dim, 128)
    class_cols = 128 * pl.cdiv(num_classes, 128)

    tb, n_tiles = _pick_batch_tile(batch, latent_dim, itemsize)
    b_pad = n_tiles * tb

    # Real VMEM footprint: codebook is double-buffered by the pipeline even
    # with a constant block index; label/out tiles are double-buffered; the
    # (tb, C) one-hot lives as a temporary.
    codebook_vmem = 2 * (pl.cdiv(num_classes, 8) * 8) * lane_cols * itemsize
    tiles_vmem = 2 * tb * (128 * 4 + lane_cols * itemsize)
    onehot_vmem = tb * class_cols * itemsize
    need = codebook_vmem + tiles_vmem + onehot_vmem
    budget = 40 << 20   # v7x-safe (64 MiB physical per TC) with compiler headroom

    if batch < min_rows_for_pallas or num_classes > 4096 or need > budget:
        # Tiny problems (launch overhead dominates) or codebooks too large to
        # hold VMEM-resident fall back to XLA's gather.
        # TODO(synk): class-dim tiling for huge codebooks is not implemented.
        return jnp.take(codebook, y, axis=0)

    y_p = y
    if b_pad != batch:
        y_p = jnp.pad(y, (0, b_pad - batch))   # pad rows gather row 0, sliced off
    y_p = y_p.reshape(b_pad, 1)

    out = pl.pallas_call(
        _onehot_gather_kernel,
        out_shape=jax.ShapeDtypeStruct((b_pad, latent_dim), codebook.dtype),
        grid=(n_tiles,),
        in_specs=[
            # labels: one (tb, 1) block per grid step
            pl.BlockSpec((tb, 1), lambda i: (i, 0)),
            # full codebook, constant block index -> Pallas keeps it VMEM
            # resident and skips redundant DMAs after the first step.
            pl.BlockSpec((num_classes, latent_dim), lambda i: (0, 0)),
        ],
        out_specs=pl.BlockSpec((tb, latent_dim), lambda i: (i, 0)),
        compiler_params=pltpu.CompilerParams(
            dimension_semantics=("parallel",),
            vmem_limit_bytes=int(max(16 << 20, min(48 << 20, need + (8 << 20)))),
        ),
    )(y_p, codebook)

    return out[:batch] if b_pad != batch else out


def make_codebook(key, num_classes, latent_dim):
    """Deterministic init matching: F.normalize(torch.randn(C, D), dim=1)."""
    temp = jax.random.normal(key, (num_classes, latent_dim), dtype=jnp.float32)
    norms = jnp.linalg.norm(temp, axis=1, keepdims=True)
    return temp / jnp.maximum(norms, 1e-12)


# TODO(synk): _eval_code / verify_quality are host-side diagnostics of the frozen
# codebook (pairwise distances / norms), not part of forward; not ported.


if __name__ == "__main__":
    key = jax.random.PRNGKey(0)
    k_code, k1, k2, k3 = jax.random.split(key, 4)

    num_classes = 16
    latent_dim = 32
    codebook = make_codebook(k_code, num_classes, latent_dim)

    # Case 1: batch that tiles evenly (2 grid steps, no tail padding).
    y1 = jax.random.randint(k1, (256,), 0, num_classes, dtype=jnp.int32)
    out1 = jax.block_until_ready(random_code_forward(y1, codebook))
    ref1 = jnp.take(codebook, y1, axis=0)
    assert out1.shape == (256, latent_dim)
    assert jnp.allclose(out1, ref1, atol=1e-5), "mismatch vs reference gather (case 1)"

    # Case 2: batch that needs tail padding (B not a multiple of the tile).
    y2 = jax.random.randint(k2, (200,), 0, num_classes, dtype=jnp.int32)
    out2 = jax.block_until_ready(random_code_forward(y2, codebook))
    ref2 = jnp.take(codebook, y2, axis=0)
    assert out2.shape == (200, latent_dim)
    assert jnp.allclose(out2, ref2, atol=1e-5), "mismatch vs reference gather (case 2)"

    # Case 3: tiny batch -> jnp.take fast path (launch overhead would dominate).
    y3 = jax.random.randint(k3, (32,), 0, num_classes, dtype=jnp.int32)
    out3 = jax.block_until_ready(random_code_forward(y3, codebook))
    assert out3.shape == (32, latent_dim)
    assert jnp.allclose(out3, jnp.take(codebook, y3, axis=0), atol=1e-5)

    print("KERNEL_OK")
</pallas_src>

<mosaic_0001>
module attributes {stable_mosaic.version = 11 : i64} {
  func.func @_onehot_gather_kernel(%arg0: i32, %arg1: memref<128x1xi32, #tpu.memory_space<vmem>>, %arg2: memref<16x32xf32, #tpu.memory_space<vmem>>, %arg3: memref<128x32xf32, #tpu.memory_space<vmem>>) attributes {dimension_semantics = [#tpu.dimension_semantics<parallel>], iteration_bounds = array<i64: 2>, scalar_prefetch = 0 : i64, scratch_operands = 0 : i64, tpu.core_type = #tpu.core_type<tc>, window_params = [{transform_indices = @transform_0, window_bounds = array<i64: 128, 1>}, {pipeline_mode = #tpu.pipeline_mode<synchronous>, transform_indices = @transform_1, window_bounds = array<i64: 16, 32>}, {transform_indices = @transform_2, window_bounds = array<i64: 128, 32>}]} {
    %c0 = arith.constant 0 : index
    %c0_0 = arith.constant 0 : index
    %0 = vector.load %arg1[%c0, %c0_0] : memref<128x1xi32, #tpu.memory_space<vmem>>, vector<128x1xi32>
    %1 = tpu.iota {dimensions = array<i32: 1>} : vector<128x16xi32>
    %2 = vector.broadcast %0 : vector<128x1xi32> to vector<128x16xi32>
    %3 = arith.cmpi eq, %2, %1 : vector<128x16xi32>
    %4 = arith.extui %3 : vector<128x16xi1> to vector<128x16xi32>
    %5 = arith.sitofp %4 : vector<128x16xi32> to vector<128x16xf32>
    %c0_1 = arith.constant 0 : index
    %c0_2 = arith.constant 0 : index
    %6 = vector.load %arg2[%c0_1, %c0_2] : memref<16x32xf32, #tpu.memory_space<vmem>>, vector<16x32xf32>
    %cst = arith.constant dense<0.000000e+00> : vector<128x32xf32>
    %7 = tpu.matmul %5, %6, %cst {dimension_numbers = #tpu.dot_dimension_numbers<[1], [0], [0], [1], [0, 0, 1, 1], [], []>, precision = #tpu.contract_precision<fp32>} : vector<128x16xf32>, vector<16x32xf32>, vector<128x32xf32> -> vector<128x32xf32>
    %c0_3 = arith.constant 0 : index
    %c0_4 = arith.constant 0 : index
    %8 = vector.load %arg3[%c0_3, %c0_4] : memref<128x32xf32, #tpu.memory_space<vmem>>, vector<128x32xf32>
    tpu.vector_store %arg3[%c0_3, %c0_4], %7 {strides = array<i32>} : memref<128x32xf32, #tpu.memory_space<vmem>>, vector<128x32xf32>,
    return
  }
  func.func @transform_0(%arg0: i32) -> (i32, i32) {
    %c0_i32 = arith.constant 0 : i32
    %c0_i32_0 = arith.constant 0 : i32
    return %arg0, %c0_i32 : i32, i32
  }
  func.func @transform_1(%arg0: i32) -> (i32, i32) {
    %c0_i32 = arith.constant 0 : i32
    %c0_i32_0 = arith.constant 0 : i32
    %c0_i32_1 = arith.constant 0 : i32
    return %c0_i32, %c0_i32_0 : i32, i32
  }
  func.func @transform_2(%arg0: i32) -> (i32, i32) {
    %c0_i32 = arith.constant 0 : i32
    %c0_i32_0 = arith.constant 0 : i32
    return %arg0, %c0_i32 : i32, i32
  }
}

</mosaic_0001>

<llo_original>
// kernel: tpu_custom_call.1
$region0: #{tpu_custom_call.1}
  #allocation0 [shape = 'u32[]', space=smem, size = 0x4, offset = 0x4, fixed_abs, tag = 'smem constant byte address 0x4 - core index']
  #allocation1 [shape = 'u32[144,128]{1,0:T(1,128)}', space=vmem, size = 0x12000, scoped, tag = 'internal scratch']
  %s0 = inlined_call_operand.vmem [shape: s32[256,1], index: 0, kind: input, shape index: {}]
  %s1 = inlined_call_operand.vmem [shape: f32[16,32], index: 1, kind: input, shape index: {}]
  %s2 = inlined_call_operand.vmem [shape: f32[256,32], index: 2, kind: output, shape index: {}]
  %s3 = sld [smem:[#allocation0]]
  $region41: #{tpu_custom_call.1} parent=0
    _
  %s5 = ssub.s32 1, %s3
  %s6 = scalar_select 0, %s5, %s3
  loop: start=0, step=1, limit=4
  $region2: #{tpu_custom_call.1} parent=0 // loop_pre_header
    _
  $region3: #{tpu_custom_call.1} parent=0 // loop_header
    %s8 = sphi 0, %s12
    %p9 = scmp.ge.s32.totalorder %s8, 4
    %s18 = sphi 0, %s20
    %s21 = sphi 0, %s18
    %s22 = sphi 0, %s21
    %s38 = sphi 0, %s22
    %s42 = sphi 0, %s42
    %s44 = sphi 0, %s42
    %s45 = sphi 0, %s44
    %s59 = sphi 0, %s45
    %s65 = sphi 0, %s67
    %s68 = sphi 0, %s65
    %s69 = sphi 0, %s68
    %s85 = sphi 0, %s69
  $region4: #{tpu_custom_call.1} parent=0 // loop_header_branch
    %11 = sbr.rel (%p9) target = $region8
  $region5: #{tpu_custom_call.1} parent=0 // loop_body
    %s13 = ssub.s32 %s8, 1
    %s14 = ssub.s32 %s8, 2
    %s15 = sadd.s32 %s8, 1
    %s16 = ssub.s32 %s8, %s15
    %p17 = scmp.eq.s32.totalorder %s16, 0
    %s19 = sadd.s32 %s18, 1
    %s20 = scalar_select %p17, %s18, %s19
    %p23 = pneg %p17
    %p24 = scmp.eq.s32.totalorder %s8, 1
    %p25 = por %p23, %p24
    %p26 = scmp.ne.s32.totalorder %s18, %s21
    %p27 = scmp.eq.s32.totalorder %s8, 0
    %p28 = por %p26, %p27
    %p29 = scmp.ne.s32.totalorder %s18, %s21
    %p30 = scmp.eq.s32.totalorder %s13, 1
    %p31 = por %p29, %p30
    %p32 = scmp.ne.s32.totalorder %s21, %s22
    %p33 = scmp.eq.s32.totalorder %s13, 0
    %p34 = por %p32, %p33
    %p35 = scmp.ne.s32.totalorder %s21, %s22
    %p36 = scmp.eq.s32.totalorder %s14, 1
    %p37 = por %p35, %p36
    %p39 = scmp.ne.s32.totalorder %s22, %s38
    %p40 = scmp.eq.s32.totalorder %s14, 0
    %p41 = por %p39, %p40
    %s43 = sadd.s32 %s42, 1
    %p46 = scmp.eq.s32.totalorder %s8, 1
    %p47 = scmp.ne.s32.totalorder %s42, %s44
    %p48 = scmp.eq.s32.totalorder %s8, 0
    %p49 = por %p47, %p48
    %p50 = scmp.ne.s32.totalorder %s42, %s44
    %p51 = scmp.eq.s32.totalorder %s13, 1
    %p52 = por %p50, %p51
    %p53 = scmp.ne.s32.totalorder %s44, %s45
    %p54 = scmp.eq.s32.totalorder %s13, 0
    %p55 = por %p53, %p54
    %p56 = scmp.ne.s32.totalorder %s44, %s45
    %p57 = scmp.eq.s32.totalorder %s14, 1
    %p58 = por %p56, %p57
    %p60 = scmp.ne.s32.totalorder %s45, %s59
    %p61 = scmp.eq.s32.totalorder %s14, 0
    %p62 = por %p60, %p61
    %s63 = ssub.s32 %s8, %s15
    %p64 = scmp.eq.s32.totalorder %s63, 0
    %s66 = sadd.s32 %s65, 1
    %s67 = scalar_select %p64, %s65, %s66
    %p70 = pneg %p64
    %p71 = scmp.eq.s32.totalorder %s8, 1
    %p72 = por %p70, %p71
    %p73 = scmp.ne.s32.totalorder %s65, %s68
    %p74 = scmp.eq.s32.totalorder %s8, 0
    %p75 = por %p73, %p74
    %p76 = scmp.ne.s32.totalorder %s65, %s68
    %p77 = scmp.eq.s32.totalorder %s13, 1
    %p78 = por %p76, %p77
    %p79 = scmp.ne.s32.totalorder %s68, %s69
    %p80 = scmp.eq.s32.totalorder %s13, 0
    %p81 = por %p79, %p80
    %p82 = scmp.ne.s32.totalorder %s68, %s69
    %p83 = scmp.eq.s32.totalorder %s14, 1
    %p84 = por %p82, %p83
    %p86 = scmp.ne.s32.totalorder %s69, %s85
    %p87 = scmp.eq.s32.totalorder %s14, 0
    %p88 = por %p86, %p87
    %p89 = scmp.le.s32.totalorder 1, %s8
    %p90 = scmp.lt.s32.totalorder %s8, 3
    %p91 = pnand %p89, %p90
    %p92 = pneg %p91
    // Predicated region
    $region9: #{tpu_custom_call.1} parent=5 // pred_check
      _
    $region10: #{tpu_custom_call.1} parent=5 // pred_check_branch
      %94 = sbr.rel (%p91) target = $region12
    $region11: #{tpu_custom_call.1} parent=5 // pred_region
      %s95 = ssub.s32 %s8, 1
      // Predicated region
      $region13: #{tpu_custom_call.1} parent=11 // pred_check
        %p96 = pneg %p55
      $region14: #{tpu_custom_call.1} parent=11 // pred_check_branch
        %98 = sbr.rel (%p96) target = $region16
      $region15: #{tpu_custom_call.1} parent=11 // pred_region
        _
      $region16: #{tpu_custom_call.1} parent=11 // pred_fallthru
        _
    $region12: #{tpu_custom_call.1} parent=5 // pred_fallthru
      _
    %p99 = scmp.lt.s32.totalorder %s8, 2
    // Predicated region
    $region17: #{tpu_custom_call.1} parent=5 // pred_check
      %p100 = pneg %p99
    $region18: #{tpu_custom_call.1} parent=5 // pred_check_branch
      %102 = sbr.rel (%p100) target = $region20
    $region19: #{tpu_custom_call.1} parent=5 // pred_region
      // Predicated region
      $region21: #{tpu_custom_call.1} parent=19 // pred_check
        %p103 = pneg %p28
      $region22: #{tpu_custom_call.1} parent=19 // pred_check_branch
        %105 = sbr.rel (%p103) target = $region24
      $region23: #{tpu_custom_call.1} parent=19 // pred_region
        %s106 = smul.u32 16, %s8
        %p107 = scmp.lt.s32.totalorder %s106, 31
        %s108 = scalar_select %p107, %s106, 31
        %s109 = smul.addr %s108, 8
        %s110 = scalar_lea.vmem %s0, %s109
        %s111 = smul.u32 16, %s8
      $region24: #{tpu_custom_call.1} parent=19 // pred_fallthru
        _
    $region20: #{tpu_custom_call.1} parent=5 // pred_fallthru
      _
    %p112 = scmp.le.s32.totalorder 1, %s8
    %p113 = scmp.lt.s32.totalorder %s8, 3
    %p114 = pnand %p112, %p113
    %p115 = pneg %p114
    // Predicated region
    $region25: #{tpu_custom_call.1} parent=5 // pred_check
      _
    $region26: #{tpu_custom_call.1} parent=5 // pred_check_branch
      %117 = sbr.rel (%p114) target = $region28
    $region27: #{tpu_custom_call.1} parent=5 // pred_region
      %s118 = ssub.s32 %s8, 1
      %s119 = smul.u32 16, %s13
      %p120 = scmp.lt.s32.totalorder %s119, 31
      %s121 = scalar_select %p120, %s119, 31
      %s122 = smul.addr %s121, 8
      %s123 = scalar_lea.vmem %s0, %s122
      %p124 = pneg %p34
      %p125 = pneg %p31
      %p126 = pneg %p55
      %p127 = pneg %p52
      %p128 = pneg %p81
      %p129 = pneg %p78
      %s130 = smul.u32 16, %s13
      %p131 = scmp.lt.s32.totalorder %s130, 31
      %s132 = scalar_select %p131, %s130, 31
      %s133 = smul.addr %s132, 8
      %s134 = scalar_lea.vmem %s2, %s133
      %s135 = smul.u32 16, %s13
      %p136 = scmp.lt.s32.totalorder %s135, 31
      %s137 = scalar_select %p136, %s135, 31
      %s138 = smul.addr %s137, 8
      %s139 = scalar_lea.vmem %s0, %s138
      %s140 = smul.u32 16, %s13
      %s141 = smul.u32 16, %s13
      %p142 = scmp.lt.s32.totalorder %s141, 31
      %s143 = scalar_select %p142, %s141, 31
      %s144 = smul.addr %s143, 8
      %s145 = scalar_lea.vmem %s2, %s144
      %s146 = smul.u32 16, %s13
      %v147 = vld [vmem:[%s139] sm:$0xff]
      %v148 = vld [vmem:[%s139 + $0x8] sm:$0xff]
      %v149 = vld [vmem:[%s139 + $0x10] sm:$0xff]
      %v150 = vld [vmem:[%s139 + $0x18] sm:$0xff]
      %v151 = vld [vmem:[%s139 + $0x20] sm:$0xff]
      %v152 = vld [vmem:[%s139 + $0x28] sm:$0xff]
      %v153 = vld [vmem:[%s139 + $0x30] sm:$0xff]
      %v154 = vld [vmem:[%s139 + $0x38] sm:$0xff]
      %v155 = vld [vmem:[%s139 + $0x40] sm:$0xff]
      %v156 = vld [vmem:[%s139 + $0x48] sm:$0xff]
      %v157 = vld [vmem:[%s139 + $0x50] sm:$0xff]
      %v158 = vld [vmem:[%s139 + $0x58] sm:$0xff]
      %v159 = vld [vmem:[%s139 + $0x60] sm:$0xff]
      %v160 = vld [vmem:[%s139 + $0x68] sm:$0xff]
      %v161 = vld [vmem:[%s139 + $0x70] sm:$0xff]
      %v162 = vld [vmem:[%s139 + $0x78] sm:$0xff]
      %v163 = vlaneseq
      %v164 = vand.u32 %v163, 127
      %165 = vset.pattern.permute.xlu0 0
      %166 = vperm.xlu0 %165, %v147
      %v167 = vpop.permute.xlu0 %166
      %168 = vset.pattern.permute.xlu0 0
      %169 = vperm.xlu0 %168, %v148
      %v170 = vpop.permute.xlu0 %169
      %171 = vset.pattern.permute.xlu0 0
      %172 = vperm.xlu0 %171, %v149
      %v173 = vpop.permute.xlu0 %172
      %174 = vset.pattern.permute.xlu0 0
      %175 = vperm.xlu0 %174, %v150
      %v176 = vpop.permute.xlu0 %175
      %177 = vset.pattern.permute.xlu0 0
      %178 = vperm.xlu0 %177, %v151
      %v179 = vpop.permute.xlu0 %178
      %180 = vset.pattern.permute.xlu0 0
      %181 = vperm.xlu0 %180, %v152
      %v182 = vpop.permute.xlu0 %181
      %183 = vset.pattern.permute.xlu0 0
      %184 = vperm.xlu0 %183, %v153
      %v185 = vpop.permute.xlu0 %184
      %186 = vset.pattern.permute.xlu0 0
      %187 = vperm.xlu0 %186, %v154
      %v188 = vpop.permute.xlu0 %187
      %189 = vset.pattern.permute.xlu0 0
      %190 = vperm.xlu0 %189, %v155
      %v191 = vpop.permute.xlu0 %190
      %192 = vset.pattern.permute.xlu0 0
      %193 = vperm.xlu0 %192, %v156
      %v194 = vpop.permute.xlu0 %193
      %195 = vset.pattern.permute.xlu0 0
      %196 = vperm.xlu0 %195, %v157
      %v197 = vpop.permute.xlu0 %196
      %198 = vset.pattern.permute.xlu0 0
      %199 = vperm.xlu0 %198, %v158
      %v200 = vpop.permute.xlu0 %199
      %201 = vset.pattern.permute.xlu0 0
      %202 = vperm.xlu0 %201, %v159
      %v203 = vpop.permute.xlu0 %202
      %204 = vset.pattern.permute.xlu0 0
      %205 = vperm.xlu0 %204, %v160
      %v206 = vpop.permute.xlu0 %205
      %207 = vset.pattern.permute.xlu0 0
      %208 = vperm.xlu0 %207, %v161
      %v209 = vpop.permute.xlu0 %208
      %210 = vset.pattern.permute.xlu0 0
      %211 = vperm.xlu0 %210, %v162
      %v212 = vpop.permute.xlu0 %211
      %vm213 = vcmp.eq.s32.totalorder %v167, %v164
      %vm214 = vcmp.eq.s32.totalorder %v170, %v164
      %vm215 = vcmp.eq.s32.totalorder %v173, %v164
      %vm216 = vcmp.eq.s32.totalorder %v176, %v164
      %vm217 = vcmp.eq.s32.totalorder %v179, %v164
      %vm218 = vcmp.eq.s32.totalorder %v182, %v164
      %vm219 = vcmp.eq.s32.totalorder %v185, %v164
      %vm220 = vcmp.eq.s32.totalorder %v188, %v164
      %vm221 = vcmp.eq.s32.totalorder %v191, %v164
      %vm222 = vcmp.eq.s32.totalorder %v194, %v164
      %vm223 = vcmp.eq.s32.totalorder %v197, %v164
      %vm224 = vcmp.eq.s32.totalorder %v200, %v164
      %vm225 = vcmp.eq.s32.totalorder %v203, %v164
      %vm226 = vcmp.eq.s32.totalorder %v206, %v164
      %vm227 = vcmp.eq.s32.totalorder %v209, %v164
      %vm228 = vcmp.eq.s32.totalorder %v212, %v164
      %v229 = vsel %vm213, 1, 0
      %v230 = vsel %vm214, 1, 0
      %v231 = vsel %vm215, 1, 0
      %v232 = vsel %vm216, 1, 0
      %v233 = vsel %vm217, 1, 0
      %v234 = vsel %vm218, 1, 0
      %v235 = vsel %vm219, 1, 0
      %v236 = vsel %vm220, 1, 0
      %v237 = vsel %vm221, 1, 0
      %v238 = vsel %vm222, 1, 0
      %v239 = vsel %vm223, 1, 0
      %v240 = vsel %vm224, 1, 0
      %v241 = vsel %vm225, 1, 0
      %v242 = vsel %vm226, 1, 0
      %v243 = vsel %vm227, 1, 0
      %v244 = vsel %vm228, 1, 0
      %v245 = vcvt.s32.f32 %v229
      %v246 = vcvt.s32.f32 %v230
      %v247 = vcvt.s32.f32 %v231
      %v248 = vcvt.s32.f32 %v232
      %v249 = vcvt.s32.f32 %v233
      %v250 = vcvt.s32.f32 %v234
      %v251 = vcvt.s32.f32 %v235
      %v252 = vcvt.s32.f32 %v236
      %v253 = vcvt.s32.f32 %v237
      %v254 = vcvt.s32.f32 %v238
      %v255 = vcvt.s32.f32 %v239
      %v256 = vcvt.s32.f32 %v240
      %v257 = vcvt.s32.f32 %v241
      %v258 = vcvt.s32.f32 %v242
      %v259 = vcvt.s32.f32 %v243
      %v260 = vcvt.s32.f32 %v244
      %v261 = vld [vmem:[%s1] sm:$0xff]
      %v262 = vld [vmem:[%s1 + $0x8] sm:$0xff]
      %vm263 = vcmask 130048
      %v265 = vsel %vm263, %v245, 0
      %v268 = vsel %vm263, %v246, 0
      %v271 = vsel %vm263, %v247, 0
      %v274 = vsel %vm263, %v248, 0
      %v277 = vsel %vm263, %v249, 0
      %v280 = vsel %vm263, %v250, 0
      %v283 = vsel %vm263, %v251, 0
      %v286 = vsel %vm263, %v252, 0
      %v289 = vsel %vm263, %v253, 0
      %v292 = vsel %vm263, %v254, 0
      %v295 = vsel %vm263, %v255, 0
      %v298 = vsel %vm263, %v256, 0
      %v301 = vsel %vm263, %v257, 0
      %v304 = vsel %vm263, %v258, 0
      %v307 = vsel %vm263, %v259, 0
      %v310 = vsel %vm263, %v260, 0
      %312 = vmatprep.subr.mxu0 0.0
      %313 = vmatpush1.msra.mxu0 0.0
      %314 = vmatprep.subr.mxu0 0.0
      %315 = vmatpush1.msra.mxu0 0.0
      %316 = vmatprep.subr.mxu0 0.0
      %317 = vmatpush1.msra.mxu0 0.0
      %318 = vmatprep.subr.mxu0 0.0
      %319 = vmatpush1.msra.mxu0 0.0
      %320 = vmatprep.subr.mxu0 0.0
      %321 = vmatpush1.msra.mxu0 0.0
      %322 = vmatprep.subr.mxu0 0.0
      %323 = vmatpush1.msra.mxu0 0.0
      %324 = vmatprep.subr.mxu0 0.0
      %325 = vmatpush1.msra.mxu0 0.0
      %326 = vmatprep.subr.mxu0 0.0
      %327 = vmatpush1.msra.mxu0 0.0
      %328 = vmatprep.subr.mxu0 0.0
      %329 = vmatpush1.msra.mxu0 0.0
      %330 = vmatprep.subr.mxu0 0.0
      %331 = vmatpush1.msra.mxu0 0.0
      %332 = vmatprep.subr.mxu0 0.0
      %333 = vmatpush1.msra.mxu0 0.0
      %334 = vmatprep.subr.mxu0 0.0
      %335 = vmatpush1.msra.mxu0 0.0
      %336 = vmatprep.subr.mxu0 0.0
      %337 = vmatpush1.msra.mxu0 0.0
      %338 = vmatprep.subr.mxu0 0.0
      %339 = vmatpush1.msra.mxu0 0.0
      %340 = vmatprep.subr.mxu0 0.0
      %v341 = vand.u32 %v262, 4294901760
      %342 = vmatpush1.msra.mxu0 %v341
      %343 = vmatprep.subr.mxu0 0.0
      %v344 = vand.u32 %v261, 4294901760
      %345 = vmatpush1.msra.mxu0 %v344
      %346 = vmatprep.subr.mxu0 0.0
      %347 = vmatpush2.msra.mxu0 0.0
      %348 = vmatprep.subr.mxu0 0.0
      %349 = vmatpush2.msra.mxu0 0.0
      %350 = vmatprep.subr.mxu0 0.0
      %351 = vmatpush2.msra.mxu0 0.0
      %352 = vmatprep.subr.mxu0 0.0
      %353 = vmatpush2.msra.mxu0 0.0
      %354 = vmatprep.subr.mxu0 0.0
      %355 = vmatpush2.msra.mxu0 0.0
      %356 = vmatprep.subr.mxu0 0.0
      %357 = vmatpush2.msra.mxu0 0.0
      %358 = vmatprep.subr.mxu0 0.0
      %359 = vmatpush2.msra.mxu0 0.0
      %360 = vmatprep.subr.mxu0 0.0
      %361 = vmatpush2.msra.mxu0 0.0
      %362 = vmatprep.subr.mxu0 0.0
      %363 = vmatpush2.msra.mxu0 0.0
      %364 = vmatprep.subr.mxu0 0.0
      %365 = vmatpush2.msra.mxu0 0.0
      %366 = vmatprep.subr.mxu0 0.0
      %367 = vmatpush2.msra.mxu0 0.0
      %368 = vmatprep.subr.mxu0 0.0
      %369 = vmatpush2.msra.mxu0 0.0
      %370 = vmatprep.subr.mxu0 0.0
      %371 = vmatpush2.msra.mxu0 0.0
      %372 = vmatprep.subr.mxu0 0.0
      %373 = vmatpush2.msra.mxu0 0.0
      %374 = vmatprep.subr.mxu0 0.0
      %375 = vmatpush2.msra.mxu0 0.0
      %376 = vmatprep.subr.mxu0 0.0
      %377 = vmatpush2.msra.mxu0 0.0
      %378 = vmatprep.mubr.f32.mxu0 0.0
      %v379 = vand.u32 %v265, 4294901760
      %v380 = vsub.f32 %v265, %v379
      %v381 = vand.u32 %v380, 4294901760
      %v382 = vsub.f32 %v380, %v381
      %v383 = vand.u32 %v382, 4294901760
      %384 = vmatmul.mubr.f32.gmra.mxu0 %v383
      %v385 = vpop.f32.mrf.mxu0
      %v386 = vadd.f32 0.0, %v385
      %v387 = vpop.f32.mrf.mxu0
      %388 = vmatprep.mubr.f32.mxu0 0.0
      %v389 = vand.u32 %v268, 4294901760
      %v390 = vsub.f32 %v268, %v389
      %v391 = vand.u32 %v390, 4294901760
      %v392 = vsub.f32 %v390, %v391
      %v393 = vand.u32 %v392, 4294901760
      %394 = vmatmul.mubr.f32.gmra.mxu0 %v393
      %v395 = vpop.f32.mrf.mxu0
      %v396 = vadd.f32 0.0, %v395
      %v397 = vpop.f32.mrf.mxu0
      %398 = vmatprep.mubr.f32.mxu0 0.0
      %v399 = vand.u32 %v271, 4294901760
      %v400 = vsub.f32 %v271, %v399
      %v401 = vand.u32 %v400, 4294901760
      %v402 = vsub.f32 %v400, %v401
      %v403 = vand.u32 %v402, 4294901760
      %404 = vmatmul.mubr.f32.gmra.mxu0 %v403
      %v405 = vpop.f32.mrf.mxu0
      %v406 = vadd.f32 0.0, %v405
      %v407 = vpop.f32.mrf.mxu0
      %408 = vmatprep.mubr.f32.mxu0 0.0
      %v409 = vand.u32 %v274, 4294901760
      %v410 = vsub.f32 %v274, %v409
      %v411 = vand.u32 %v410, 4294901760
      %v412 = vsub.f32 %v410, %v411
      %v413 = vand.u32 %v412, 4294901760
      %414 = vmatmul.mubr.f32.gmra.mxu0 %v413
      %v415 = vpop.f32.mrf.mxu0
      %v416 = vadd.f32 0.0, %v415
      %v417 = vpop.f32.mrf.mxu0
      %418 = vmatprep.mubr.f32.mxu0 0.0
      %v419 = vand.u32 %v277, 4294901760
      %v420 = vsub.f32 %v277, %v419
      %v421 = vand.u32 %v420, 4294901760
      %v422 = vsub.f32 %v420, %v421
      %v423 = vand.u32 %v422, 4294901760
      %424 = vmatmul.mubr.f32.gmra.mxu0 %v423
      %v425 = vpop.f32.mrf.mxu0
      %v426 = vadd.f32 0.0, %v425
      %v427 = vpop.f32.mrf.mxu0
      %428 = vmatprep.mubr.f32.mxu0 0.0
      %v429 = vand.u32 %v280, 4294901760
      %v430 = vsub.f32 %v280, %v429
      %v431 = vand.u32 %v430, 4294901760
      %v432 = vsub.f32 %v430, %v431
      %v433 = vand.u32 %v432, 4294901760
      %434 = vmatmul.mubr.f32.gmra.mxu0 %v433
      %v435 = vpop.f32.mrf.mxu0
      %v436 = vadd.f32 0.0, %v435
      %v437 = vpop.f32.mrf.mxu0
      %438 = vmatprep.mubr.f32.mxu0 0.0
      %v439 = vand.u32 %v283, 4294901760
      %v440 = vsub.f32 %v283, %v439
      %v441 = vand.u32 %v440, 4294901760
      %v442 = vsub.f32 %v440, %v441
      %v443 = vand.u32 %v442, 4294901760
      %444 = vmatmul.mubr.f32.gmra.mxu0 %v443
      %v445 = vpop.f32.mrf.mxu0
      %v446 = vadd.f32 0.0, %v445
      %v447 = vpop.f32.mrf.mxu0
      %448 = vmatprep.mubr.f32.mxu0 0.0
      %v449 = vand.u32 %v286, 4294901760
      %v450 = vsub.f32 %v286, %v449
      %v451 = vand.u32 %v450, 4294901760
      %v452 = vsub.f32 %v450, %v451
      %v453 = vand.u32 %v452, 4294901760
      %454 = vmatmul.mubr.f32.gmra.mxu0 %v453
      %v455 = vpop.f32.mrf.mxu0
      %v456 = vadd.f32 0.0, %v455
      %v457 = vpop.f32.mrf.mxu0
      %458 = vmatprep.mubr.f32.mxu0 0.0
      %v459 = vand.u32 %v289, 4294901760
      %v460 = vsub.f32 %v289, %v459
      %v461 = vand.u32 %v460, 4294901760
      %v462 = vsub.f32 %v460, %v461
      %v463 = vand.u32 %v462, 4294901760
      %464 = vmatmul.mubr.f32.gmra.mxu0 %v463
      %v465 = vpop.f32.mrf.mxu0
      %v466 = vadd.f32 0.0, %v465
      %v467 = vpop.f32.mrf.mxu0
      %468 = vmatprep.mubr.f32.mxu0 0.0
      %v469 = vand.u32 %v292, 4294901760
      %v470 = vsub.f32 %v292, %v469
      %v471 = vand.u32 %v470, 4294901760
      %v472 = vsub.f32 %v470, %v471
      %v473 = vand.u32 %v472, 4294901760
      %474 = vmatmul.mubr.f32.gmra.mxu0 %v473
      %v475 = vpop.f32.mrf.mxu0
      %v476 = vadd.f32 0.0, %v475
      %v477 = vpop.f32.mrf.mxu0
      %478 = vmatprep.mubr.f32.mxu0 0.0
      %v479 = vand.u32 %v295, 4294901760
      %v480 = vsub.f32 %v295, %v479
      %v481 = vand.u32 %v480, 4294901760
      %v482 = vsub.f32 %v480, %v481
      %v483 = vand.u32 %v482, 4294901760
      %484 = vmatmul.mubr.f32.gmra.mxu0 %v483
      %v485 = vpop.f32.mrf.mxu0
      %v486 = vadd.f32 0.0, %v485
      %v487 = vpop.f32.mrf.mxu0
      %488 = vmatprep.mubr.f32.mxu0 0.0
      %v489 = vand.u32 %v298, 4294901760
      %v490 = vsub.f32 %v298, %v489
      %v491 = vand.u32 %v490, 4294901760
      %v492 = vsub.f32 %v490, %v491
      %v493 = vand.u32 %v492, 4294901760
      %494 = vmatmul.mubr.f32.gmra.mxu0 %v493
      %v495 = vpop.f32.mrf.mxu0
      %v496 = vadd.f32 0.0, %v495
      %v497 = vpop.f32.mrf.mxu0
      %498 = vmatprep.mubr.f32.mxu0 0.0
      %v499 = vand.u32 %v301, 4294901760
      %v500 = vsub.f32 %v301, %v499
      %v501 = vand.u32 %v500, 4294901760
      %v502 = vsub.f32 %v500, %v501
      %v503 = vand.u32 %v502, 4294901760
      %504 = vmatmul.mubr.f32.gmra.mxu0 %v503
      %v505 = vpop.f32.mrf.mxu0
      %v506 = vadd.f32 0.0, %v505
      %v507 = vpop.f32.mrf.mxu0
      %508 = vmatprep.mubr.f32.mxu0 0.0
      %v509 = vand.u32 %v304, 4294901760
      %v510 = vsub.f32 %v304, %v509
      %v511 = vand.u32 %v510, 4294901760
      %v512 = vsub.f32 %v510, %v511
      %v513 = vand.u32 %v512, 4294901760
      %514 = vmatmul.mubr.f32.gmra.mxu0 %v513
      %v515 = vpop.f32.mrf.mxu0
      %v516 = vadd.f32 0.0, %v515
      %v517 = vpop.f32.mrf.mxu0
      %518 = vmatprep.mubr.f32.mxu0 0.0
      %v519 = vand.u32 %v307, 4294901760
      %v520 = vsub.f32 %v307, %v519
      %v521 = vand.u32 %v520, 4294901760
      %v522 = vsub.f32 %v520, %v521
      %v523 = vand.u32 %v522, 4294901760
      %524 = vmatmul.mubr.f32.gmra.mxu0 %v523
      %v525 = vpop.f32.mrf.mxu0
      %v526 = vadd.f32 0.0, %v525
      %v527 = vpop.f32.mrf.mxu0
      %528 = vmatprep.mubr.f32.mxu0 0.0
      %v529 = vand.u32 %v310, 4294901760
      %v530 = vsub.f32 %v310, %v529
      %v531 = vand.u32 %v530, 4294901760
      %v532 = vsub.f32 %v530, %v531
      %v533 = vand.u32 %v532, 4294901760
      %534 = vmatmul.mubr.f32.gmra.mxu0 %v533
      %v535 = vpop.f32.mrf.mxu0
      %v536 = vadd.f32 0.0, %v535
      %v537 = vpop.f32.mrf.mxu0
      %538 = vdwg.mxu0
      %539 = vmatprep.subr.mxu0 0.0
      %540 = vmatpush1.msra.mxu0 0.0
      %541 = vmatprep.subr.mxu0 0.0
      %542 = vmatpush1.msra.mxu0 0.0
      %543 = vmatprep.subr.mxu0 0.0
      %544 = vmatpush1.msra.mxu0 0.0
      %545 = vmatprep.subr.mxu0 0.0
      %546 = vmatpush1.msra.mxu0 0.0
      %547 = vmatprep.subr.mxu0 0.0
      %548 = vmatpush1.msra.mxu0 0.0
      %549 = vmatprep.subr.mxu0 0.0
      %550 = vmatpush1.msra.mxu0 0.0
      %551 = vmatprep.subr.mxu0 0.0
      %552 = vmatpush1.msra.mxu0 0.0
      %553 = vmatprep.subr.mxu0 0.0
      %554 = vmatpush1.msra.mxu0 0.0
      %555 = vmatprep.subr.mxu0 0.0
      %556 = vmatpush1.msra.mxu0 0.0
      %557 = vmatprep.subr.mxu0 0.0
      %558 = vmatpush1.msra.mxu0 0.0
      %559 = vmatprep.subr.mxu0 0.0
      %560 = vmatpush1.msra.mxu0 0.0
      %561 = vmatprep.subr.mxu0 0.0
      %562 = vmatpush1.msra.mxu0 0.0
      %563 = vmatprep.subr.mxu0 0.0
      %564 = vmatpush1.msra.mxu0 0.0
      %565 = vmatprep.subr.mxu0 0.0
      %566 = vmatpush1.msra.mxu0 0.0
      %567 = vmatprep.subr.mxu0 0.0
      %v568 = vand.u32 %v262, 4294901760
      %v569 = vsub.f32 %v262, %v568
      %v570 = vand.u32 %v569, 4294901760
      %v571 = vsub.f32 %v569, %v570
      %v572 = vand.u32 %v571, 4294901760
      %573 = vmatpush1.msra.mxu0 %v572
      %574 = vmatprep.subr.mxu0 0.0
      %v575 = vand.u32 %v261, 4294901760
      %v576 = vsub.f32 %v261, %v575
      %v577 = vand.u32 %v576, 4294901760
      %v578 = vsub.f32 %v576, %v577
      %v579 = vand.u32 %v578, 4294901760
      %580 = vmatpush1.msra.mxu0 %v579
      %581 = vmatprep.subr.mxu0 0.0
      %582 = vmatpush2.msra.mxu0 0.0
      %583 = vmatprep.subr.mxu0 0.0
      %584 = vmatpush2.msra.mxu0 0.0
      %585 = vmatprep.subr.mxu0 0.0
      %586 = vmatpush2.msra.mxu0 0.0
      %587 = vmatprep.subr.mxu0 0.0
      %588 = vmatpush2.msra.mxu0 0.0
      %589 = vmatprep.subr.mxu0 0.0
      %590 = vmatpush2.msra.mxu0 0.0
      %591 = vmatprep.subr.mxu0 0.0
      %592 = vmatpush2.msra.mxu0 0.0
      %593 = vmatprep.subr.mxu0 0.0
      %594 = vmatpush2.msra.mxu0 0.0
      %595 = vmatprep.subr.mxu0 0.0
      %596 = vmatpush2.msra.mxu0 0.0
      %597 = vmatprep.subr.mxu0 0.0
      %598 = vmatpush2.msra.mxu0 0.0
      %599 = vmatprep.subr.mxu0 0.0
      %600 = vmatpush2.msra.mxu0 0.0
      %601 = vmatprep.subr.mxu0 0.0
      %602 = vmatpush2.msra.mxu0 0.0
      %603 = vmatprep.subr.mxu0 0.0
      %604 = vmatpush2.msra.mxu0 0.0
      %605 = vmatprep.subr.mxu0 0.0
      %606 = vmatpush2.msra.mxu0 0.0
      %607 = vmatprep.subr.mxu0 0.0
      %608 = vmatpush2.msra.mxu0 0.0
      %609 = vmatprep.subr.mxu0 0.0
      %610 = vmatpush2.msra.mxu0 0.0
      %611 = vmatprep.subr.mxu0 0.0
      %612 = vmatpush2.msra.mxu0 0.0
      %613 = vmatprep.mubr.f32.mxu0 0.0
      %v614 = vand.u32 %v265, 4294901760
      %615 = vmatmul.mubr.f32.gmra.mxu0 %v614
      %v616 = vpop.f32.mrf.mxu0
      %v617 = vadd.f32 %v386, %v616
      %v618 = vpop.f32.mrf.mxu0
      %619 = vmatprep.mubr.f32.mxu0 0.0
      %v620 = vand.u32 %v268, 4294901760
      %621 = vmatmul.mubr.f32.gmra.mxu0 %v620
      %v622 = vpop.f32.mrf.mxu0
      %v623 = vadd.f32 %v396, %v622
      %v624 = vpop.f32.mrf.mxu0
      %625 = vmatprep.mubr.f32.mxu0 0.0
      %v626 = vand.u32 %v271, 4294901760
      %627 = vmatmul.mubr.f32.gmra.mxu0 %v626
      %v628 = vpop.f32.mrf.mxu0
      %v629 = vadd.f32 %v406, %v628
      %v630 = vpop.f32.mrf.mxu0
      %631 = vmatprep.mubr.f32.mxu0 0.0
      %v632 = vand.u32 %v274, 4294901760
      %633 = vmatmul.mubr.f32.gmra.mxu0 %v632
      %v634 = vpop.f32.mrf.mxu0
      %v635 = vadd.f32 %v416, %v634
      %v636 = vpop.f32.mrf.mxu0
      %637 = vmatprep.mubr.f32.mxu0 0.0
      %v638 = vand.u32 %v277, 4294901760
      %639 = vmatmul.mubr.f32.gmra.mxu0 %v638
      %v640 = vpop.f32.mrf.mxu0
      %v641 = vadd.f32 %v426, %v640
      %v642 = vpop.f32.mrf.mxu0
      %643 = vmatprep.mubr.f32.mxu0 0.0
      %v644 = vand.u32 %v280, 4294901760
      %645 = vmatmul.mubr.f32.gmra.mxu0 %v644
      %v646 = vpop.f32.mrf.mxu0
      %v647 = vadd.f32 %v436, %v646
      %v648 = vpop.f32.mrf.mxu0
      %649 = vmatprep.mubr.f32.mxu0 0.0
      %v650 = vand.u32 %v283, 4294901760
      %651 = vmatmul.mubr.f32.gmra.mxu0 %v650
      %v652 = vpop.f32.mrf.mxu0
      %v653 = vadd.f32 %v446, %v652
      %v654 = vpop.f32.mrf.mxu0
      %655 = vmatprep.mubr.f32.mxu0 0.0
      %v656 = vand.u32 %v286, 4294901760
      %657 = vmatmul.mubr.f32.gmra.mxu0 %v656
      %v658 = vpop.f32.mrf.mxu0
      %v659 = vadd.f32 %v456, %v658
      %v660 = vpop.f32.mrf.mxu0
      %661 = vmatprep.mubr.f32.mxu0 0.0
      %v662 = vand.u32 %v289, 4294901760
      %663 = vmatmul.mubr.f32.gmra.mxu0 %v662
      %v664 = vpop.f32.mrf.mxu0
      %v665 = vadd.f32 %v466, %v664
      %v666 = vpop.f32.mrf.mxu0
      %667 = vmatprep.mubr.f32.mxu0 0.0
      %v668 = vand.u32 %v292, 4294901760
      %669 = vmatmul.mubr.f32.gmra.mxu0 %v668
      %v670 = vpop.f32.mrf.mxu0
      %v671 = vadd.f32 %v476, %v670
      %v672 = vpop.f32.mrf.mxu0
      %673 = vmatprep.mubr.f32.mxu0 0.0
      %v674 = vand.u32 %v295, 4294901760
      %675 = vmatmul.mubr.f32.gmra.mxu0 %v674
      %v676 = vpop.f32.mrf.mxu0
      %v677 = vadd.f32 %v486, %v676
      %v678 = vpop.f32.mrf.mxu0
      %679 = vmatprep.mubr.f32.mxu0 0.0
      %v680 = vand.u32 %v298, 4294901760
      %681 = vmatmul.mubr.f32.gmra.mxu0 %v680
      %v682 = vpop.f32.mrf.mxu0
      %v683 = vadd.f32 %v496, %v682
      %v684 = vpop.f32.mrf.mxu0
      %685 = vmatprep.mubr.f32.mxu0 0.0
      %v686 = vand.u32 %v301, 4294901760
      %687 = vmatmul.mubr.f32.gmra.mxu0 %v686
      %v688 = vpop.f32.mrf.mxu0
      %v689 = vadd.f32 %v506, %v688
      %v690 = vpop.f32.mrf.mxu0
      %691 = vmatprep.mubr.f32.mxu0 0.0
      %v692 = vand.u32 %v304, 4294901760
      %693 = vmatmul.mubr.f32.gmra.mxu0 %v692
      %v694 = vpop.f32.mrf.mxu0
      %v695 = vadd.f32 %v516, %v694
      %v696 = vpop.f32.mrf.mxu0
      %697 = vmatprep.mubr.f32.mxu0 0.0
      %v698 = vand.u32 %v307, 4294901760
      %699 = vmatmul.mubr.f32.gmra.mxu0 %v698
      %v700 = vpop.f32.mrf.mxu0
      %v701 = vadd.f32 %v526, %v700
      %v702 = vpop.f32.mrf.mxu0
      %703 = vmatprep.mubr.f32.mxu0 0.0
      %v704 = vand.u32 %v310, 4294901760
      %705 = vmatmul.mubr.f32.gmra.mxu0 %v704
      %v706 = vpop.f32.mrf.mxu0
      %v707 = vadd.f32 %v536, %v706
      %v708 = vpop.f32.mrf.mxu0
      %709 = vdwg.mxu0
      %710 = vmatprep.subr.mxu0 0.0
      %711 = vmatpush1.msra.mxu0 0.0
      %712 = vmatprep.subr.mxu0 0.0
      %713 = vmatpush1.msra.mxu0 0.0
      %714 = vmatprep.subr.mxu0 0.0
      %715 = vmatpush1.msra.mxu0 0.0
      %716 = vmatprep.subr.mxu0 0.0
      %717 = vmatpush1.msra.mxu0 0.0
      %718 = vmatprep.subr.mxu0 0.0
      %719 = vmatpush1.msra.mxu0 0.0
      %720 = vmatprep.subr.mxu0 0.0
      %721 = vmatpush1.msra.mxu0 0.0
      %722 = vmatprep.subr.mxu0 0.0
      %723 = vmatpush1.msra.mxu0 0.0
      %724 = vmatprep.subr.mxu0 0.0
      %725 = vmatpush1.msra.mxu0 0.0
      %726 = vmatprep.subr.mxu0 0.0
      %727 = vmatpush1.msra.mxu0 0.0
      %728 = vmatprep.subr.mxu0 0.0
      %729 = vmatpush1.msra.mxu0 0.0
      %730 = vmatprep.subr.mxu0 0.0
      %731 = vmatpush1.msra.mxu0 0.0
      %732 = vmatprep.subr.mxu0 0.0
      %733 = vmatpush1.msra.mxu0 0.0
      %734 = vmatprep.subr.mxu0 0.0
      %735 = vmatpush1.msra.mxu0 0.0
      %736 = vmatprep.subr.mxu0 0.0
      %737 = vmatpush1.msra.mxu0 0.0
      %738 = vmatprep.subr.mxu0 0.0
      %v739 = vand.u32 %v262, 4294901760
      %v740 = vsub.f32 %v262, %v739
      %741 = vmatpush1.msra.mxu0 %v740
      %742 = vmatprep.subr.mxu0 0.0
      %v743 = vand.u32 %v261, 4294901760
      %v744 = vsub.f32 %v261, %v743
      %745 = vmatpush1.msra.mxu0 %v744
      %746 = vmatprep.subr.mxu0 0.0
      %747 = vmatpush2.msra.mxu0 0.0
      %748 = vmatprep.subr.mxu0 0.0
      %749 = vmatpush2.msra.mxu0 0.0
      %750 = vmatprep.subr.mxu0 0.0
      %751 = vmatpush2.msra.mxu0 0.0
      %752 = vmatprep.subr.mxu0 0.0
      %753 = vmatpush2.msra.mxu0 0.0
      %754 = vmatprep.subr.mxu0 0.0
      %755 = vmatpush2.msra.mxu0 0.0
      %756 = vmatprep.subr.mxu0 0.0
      %757 = vmatpush2.msra.mxu0 0.0
      %758 = vmatprep.subr.mxu0 0.0
      %759 = vmatpush2.msra.mxu0 0.0
      %760 = vmatprep.subr.mxu0 0.0
      %761 = vmatpush2.msra.mxu0 0.0
      %762 = vmatprep.subr.mxu0 0.0
      %763 = vmatpush2.msra.mxu0 0.0
      %764 = vmatprep.subr.mxu0 0.0
      %765 = vmatpush2.msra.mxu0 0.0
      %766 = vmatprep.subr.mxu0 0.0
      %767 = vmatpush2.msra.mxu0 0.0
      %768 = vmatprep.subr.mxu0 0.0
      %769 = vmatpush2.msra.mxu0 0.0
      %770 = vmatprep.subr.mxu0 0.0
      %771 = vmatpush2.msra.mxu0 0.0
      %772 = vmatprep.subr.mxu0 0.0
      %773 = vmatpush2.msra.mxu0 0.0
      %774 = vmatprep.subr.mxu0 0.0
      %775 = vmatpush2.msra.mxu0 0.0
      %776 = vmatprep.subr.mxu0 0.0
      %777 = vmatpush2.msra.mxu0 0.0
      %778 = vmatprep.mubr.f32.mxu0 0.0
      %v779 = vand.u32 %v265, 4294901760
      %v780 = vsub.f32 %v265, %v779
      %781 = vmatmul.mubr.f32.gmra.mxu0 %v780
      %v782 = vpop.f32.mrf.mxu0
      %v783 = vadd.f32 %v617, %v782
      %v784 = vpop.f32.mrf.mxu0
      %785 = vmatprep.mubr.f32.mxu0 0.0
      %v786 = vand.u32 %v268, 4294901760
      %v787 = vsub.f32 %v268, %v786
      %788 = vmatmul.mubr.f32.gmra.mxu0 %v787
      %v789 = vpop.f32.mrf.mxu0
      %v790 = vadd.f32 %v623, %v789
      %v791 = vpop.f32.mrf.mxu0
      %792 = vmatprep.mubr.f32.mxu0 0.0
      %v793 = vand.u32 %v271, 4294901760
      %v794 = vsub.f32 %v271, %v793
      %795 = vmatmul.mubr.f32.gmra.mxu0 %v794
      %v796 = vpop.f32.mrf.mxu0
      %v797 = vadd.f32 %v629, %v796
      %v798 = vpop.f32.mrf.mxu0
      %799 = vmatprep.mubr.f32.mxu0 0.0
      %v800 = vand.u32 %v274, 4294901760
      %v801 = vsub.f32 %v274, %v800
      %802 = vmatmul.mubr.f32.gmra.mxu0 %v801
      %v803 = vpop.f32.mrf.mxu0
      %v804 = vadd.f32 %v635, %v803
      %v805 = vpop.f32.mrf.mxu0
      %806 = vmatprep.mubr.f32.mxu0 0.0
      %v807 = vand.u32 %v277, 4294901760
      %v808 = vsub.f32 %v277, %v807
      %809 = vmatmul.mubr.f32.gmra.mxu0 %v808
      %v810 = vpop.f32.mrf.mxu0
      %v811 = vadd.f32 %v641, %v810
      %v812 = vpop.f32.mrf.mxu0
      %813 = vmatprep.mubr.f32.mxu0 0.0
      %v814 = vand.u32 %v280, 4294901760
      %v815 = vsub.f32 %v280, %v814
      %816 = vmatmul.mubr.f32.gmra.mxu0 %v815
      %v817 = vpop.f32.mrf.mxu0
      %v818 = vadd.f32 %v647, %v817
      %v819 = vpop.f32.mrf.mxu0
      %820 = vmatprep.mubr.f32.mxu0 0.0
      %v821 = vand.u32 %v283, 4294901760
      %v822 = vsub.f32 %v283, %v821
      %823 = vmatmul.mubr.f32.gmra.mxu0 %v822
      %v824 = vpop.f32.mrf.mxu0
      %v825 = vadd.f32 %v653, %v824
      %v826 = vpop.f32.mrf.mxu0
      %827 = vmatprep.mubr.f32.mxu0 0.0
      %v828 = vand.u32 %v286, 4294901760
      %v829 = vsub.f32 %v286, %v828
      %830 = vmatmul.mubr.f32.gmra.mxu0 %v829
      %v831 = vpop.f32.mrf.mxu0
      %v832 = vadd.f32 %v659, %v831
      %v833 = vpop.f32.mrf.mxu0
      %834 = vmatprep.mubr.f32.mxu0 0.0
      %v835 = vand.u32 %v289, 4294901760
      %v836 = vsub.f32 %v289, %v835
      %837 = vmatmul.mubr.f32.gmra.mxu0 %v836
      %v838 = vpop.f32.mrf.mxu0
      %v839 = vadd.f32 %v665, %v838
      %v840 = vpop.f32.mrf.mxu0
      %841 = vmatprep.mubr.f32.mxu0 0.0
      %v842 = vand.u32 %v292, 4294901760
      %v843 = vsub.f32 %v292, %v842
      %844 = vmatmul.mubr.f32.gmra.mxu0 %v843
      %v845 = vpop.f32.mrf.mxu0
      %v846 = vadd.f32 %v671, %v845
      %v847 = vpop.f32.mrf.mxu0
      %848 = vmatprep.mubr.f32.mxu0 0.0
      %v849 = vand.u32 %v295, 4294901760
      %v850 = vsub.f32 %v295, %v849
      %851 = vmatmul.mubr.f32.gmra.mxu0 %v850
      %v852 = vpop.f32.mrf.mxu0
      %v853 = vadd.f32 %v677, %v852
      %v854 = vpop.f32.mrf.mxu0
      %855 = vmatprep.mubr.f32.mxu0 0.0
      %v856 = vand.u32 %v298, 4294901760
      %v857 = vsub.f32 %v298, %v856
      %858 = vmatmul.mubr.f32.gmra.mxu0 %v857
      %v859 = vpop.f32.mrf.mxu0
      %v860 = vadd.f32 %v683, %v859
      %v861 = vpop.f32.mrf.mxu0
      %862 = vmatprep.mubr.f32.mxu0 0.0
      %v863 = vand.u32 %v301, 4294901760
      %v864 = vsub.f32 %v301, %v863
      %865 = vmatmul.mubr.f32.gmra.mxu0 %v864
      %v866 = vpop.f32.mrf.mxu0
      %v867 = vadd.f32 %v689, %v866
      %v868 = vpop.f32.mrf.mxu0
      %869 = vmatprep.mubr.f32.mxu0 0.0
      %v870 = vand.u32 %v304, 4294901760
      %v871 = vsub.f32 %v304, %v870
      %872 = vmatmul.mubr.f32.gmra.mxu0 %v871
      %v873 = vpop.f32.mrf.mxu0
      %v874 = vadd.f32 %v695, %v873
      %v875 = vpop.f32.mrf.mxu0
      %876 = vmatprep.mubr.f32.mxu0 0.0
      %v877 = vand.u32 %v307, 4294901760
      %v878 = vsub.f32 %v307, %v877
      %879 = vmatmul.mubr.f32.gmra.mxu0 %v878
      %v880 = vpop.f32.mrf.mxu0
      %v881 = vadd.f32 %v701, %v880
      %v882 = vpop.f32.mrf.mxu0
      %883 = vmatprep.mubr.f32.mxu0 0.0
      %v884 = vand.u32 %v310, 4294901760
      %v885 = vsub.f32 %v310, %v884
      %886 = vmatmul.mubr.f32.gmra.mxu0 %v885
      %v887 = vpop.f32.mrf.mxu0
      %v888 = vadd.f32 %v707, %v887
      %v889 = vpop.f32.mrf.mxu0
      %890 = vdwg.mxu0
      %891 = vmatprep.subr.mxu0 0.0
      %892 = vmatpush1.msra.mxu0 0.0
      %893 = vmatprep.subr.mxu0 0.0
      %894 = vmatpush1.msra.mxu0 0.0
      %895 = vmatprep.subr.mxu0 0.0
      %896 = vmatpush1.msra.mxu0 0.0
      %897 = vmatprep.subr.mxu0 0.0
      %898 = vmatpush1.msra.mxu0 0.0
      %899 = vmatprep.subr.mxu0 0.0
      %900 = vmatpush1.msra.mxu0 0.0
      %901 = vmatprep.subr.mxu0 0.0
      %902 = vmatpush1.msra.mxu0 0.0
      %903 = vmatprep.subr.mxu0 0.0
      %904 = vmatpush1.msra.mxu0 0.0
      %905 = vmatprep.subr.mxu0 0.0
      %906 = vmatpush1.msra.mxu0 0.0
      %907 = vmatprep.subr.mxu0 0.0
      %908 = vmatpush1.msra.mxu0 0.0
      %909 = vmatprep.subr.mxu0 0.0
      %910 = vmatpush1.msra.mxu0 0.0
      %911 = vmatprep.subr.mxu0 0.0
      %912 = vmatpush1.msra.mxu0 0.0
      %913 = vmatprep.subr.mxu0 0.0
      %914 = vmatpush1.msra.mxu0 0.0
      %915 = vmatprep.subr.mxu0 0.0
      %916 = vmatpush1.msra.mxu0 0.0
      %917 = vmatprep.subr.mxu0 0.0
      %918 = vmatpush1.msra.mxu0 0.0
      %919 = vmatprep.subr.mxu0 0.0
      %v920 = vand.u32 %v262, 4294901760
      %921 = vmatpush1.msra.mxu0 %v920
      %922 = vmatprep.subr.mxu0 0.0
      %v923 = vand.u32 %v261, 4294901760
      %924 = vmatpush1.msra.mxu0 %v923
      %925 = vmatprep.subr.mxu0 0.0
      %926 = vmatpush2.msra.mxu0 0.0
      %927 = vmatprep.subr.mxu0 0.0
      %928 = vmatpush2.msra.mxu0 0.0
      %929 = vmatprep.subr.mxu0 0.0
      %930 = vmatpush2.msra.mxu0 0.0
      %931 = vmatprep.subr.mxu0 0.0
      %932 = vmatpush2.msra.mxu0 0.0
      %933 = vmatprep.subr.mxu0 0.0
      %934 = vmatpush2.msra.mxu0 0.0
      %935 = vmatprep.subr.mxu0 0.0
      %936 = vmatpush2.msra.mxu0 0.0
      %937 = vmatprep.subr.mxu0 0.0
      %938 = vmatpush2.msra.mxu0 0.0
      %939 = vmatprep.subr.mxu0 0.0
      %940 = vmatpush2.msra.mxu0 0.0
      %941 = vmatprep.subr.mxu0 0.0
      %942 = vmatpush2.msra.mxu0 0.0
      %943 = vmatprep.subr.mxu0 0.0
      %944 = vmatpush2.msra.mxu0 0.0
      %945 = vmatprep.subr.mxu0 0.0
      %946 = vmatpush2.msra.mxu0 0.0
      %947 = vmatprep.subr.mxu0 0.0
      %948 = vmatpush2.msra.mxu0 0.0
      %949 = vmatprep.subr.mxu0 0.0
      %950 = vmatpush2.msra.mxu0 0.0
      %951 = vmatprep.subr.mxu0 0.0
      %952 = vmatpush2.msra.mxu0 0.0
      %953 = vmatprep.subr.mxu0 0.0
      %954 = vmatpush2.msra.mxu0 0.0
      %955 = vmatprep.subr.mxu0 0.0
      %956 = vmatpush2.msra.mxu0 0.0
      %957 = vmatprep.mubr.f32.mxu0 0.0
      %v958 = vand.u32 %v265, 4294901760
      %v959 = vsub.f32 %v265, %v958
      %v960 = vand.u32 %v959, 4294901760
      %961 = vmatmul.mubr.f32.gmra.mxu0 %v960
      %v962 = vpop.f32.mrf.mxu0
      %v963 = vadd.f32 %v783, %v962
      %v964 = vpop.f32.mrf.mxu0
      %965 = vmatprep.mubr.f32.mxu0 0.0
      %v966 = vand.u32 %v268, 4294901760
      %v967 = vsub.f32 %v268, %v966
      %v968 = vand.u32 %v967, 4294901760
      %969 = vmatmul.mubr.f32.gmra.mxu0 %v968
      %v970 = vpop.f32.mrf.mxu0
      %v971 = vadd.f32 %v790, %v970
      %v972 = vpop.f32.mrf.mxu0
      %973 = vmatprep.mubr.f32.mxu0 0.0
      %v974 = vand.u32 %v271, 4294901760
      %v975 = vsub.f32 %v271, %v974
      %v976 = vand.u32 %v975, 4294901760
      %977 = vmatmul.mubr.f32.gmra.mxu0 %v976
      %v978 = vpop.f32.mrf.mxu0
      %v979 = vadd.f32 %v797, %v978
      %v980 = vpop.f32.mrf.mxu0
      %981 = vmatprep.mubr.f32.mxu0 0.0
      %v982 = vand.u32 %v274, 4294901760
      %v983 = vsub.f32 %v274, %v982
      %v984 = vand.u32 %v983, 4294901760
      %985 = vmatmul.mubr.f32.gmra.mxu0 %v984
      %v986 = vpop.f32.mrf.mxu0
      %v987 = vadd.f32 %v804, %v986
      %v988 = vpop.f32.mrf.mxu0
      %989 = vmatprep.mubr.f32.mxu0 0.0
      %v990 = vand.u32 %v277, 4294901760
      %v991 = vsub.f32 %v277, %v990
      %v992 = vand.u32 %v991, 4294901760
      %993 = vmatmul.mubr.f32.gmra.mxu0 %v992
      %v994 = vpop.f32.mrf.mxu0
      %v995 = vadd.f32 %v811, %v994
      %v996 = vpop.f32.mrf.mxu0
      %997 = vmatprep.mubr.f32.mxu0 0.0
      %v998 = vand.u32 %v280, 4294901760
      %v999 = vsub.f32 %v280, %v998
      %v1000 = vand.u32 %v999, 4294901760
      %1001 = vmatmul.mubr.f32.gmra.mxu0 %v1000
      %v1002 = vpop.f32.mrf.mxu0
      %v1003 = vadd.f32 %v818, %v1002
      %v1004 = vpop.f32.mrf.mxu0
      %1005 = vmatprep.mubr.f32.mxu0 0.0
      %v1006 = vand.u32 %v283, 4294901760
      %v1007 = vsub.f32 %v283, %v1006
      %v1008 = vand.u32 %v1007, 4294901760
      %1009 = vmatmul.mubr.f32.gmra.mxu0 %v1008
      %v1010 = vpop.f32.mrf.mxu0
      %v1011 = vadd.f32 %v825, %v1010
      %v1012 = vpop.f32.mrf.mxu0
      %1013 = vmatprep.mubr.f32.mxu0 0.0
      %v1014 = vand.u32 %v286, 4294901760
      %v1015 = vsub.f32 %v286, %v1014
      %v1016 = vand.u32 %v1015, 4294901760
      %1017 = vmatmul.mubr.f32.gmra.mxu0 %v1016
      %v1018 = vpop.f32.mrf.mxu0
      %v1019 = vadd.f32 %v832, %v1018
      %v1020 = vpop.f32.mrf.mxu0
      %1021 = vmatprep.mubr.f32.mxu0 0.0
      %v1022 = vand.u32 %v289, 4294901760
      %v1023 = vsub.f32 %v289, %v1022
      %v1024 = vand.u32 %v1023, 4294901760
      %1025 = vmatmul.mubr.f32.gmra.mxu0 %v1024
      %v1026 = vpop.f32.mrf.mxu0
      %v1027 = vadd.f32 %v839, %v1026
      %v1028 = vpop.f32.mrf.mxu0
      %1029 = vmatprep.mubr.f32.mxu0 0.0
      %v1030 = vand.u32 %v292, 4294901760
      %v1031 = vsub.f32 %v292, %v1030
      %v1032 = vand.u32 %v1031, 4294901760
      %1033 = vmatmul.mubr.f32.gmra.mxu0 %v1032
      %v1034 = vpop.f32.mrf.mxu0
      %v1035 = vadd.f32 %v846, %v1034
      %v1036 = vpop.f32.mrf.mxu0
      %1037 = vmatprep.mubr.f32.mxu0 0.0
      %v1038 = vand.u32 %v295, 4294901760
      %v1039 = vsub.f32 %v295, %v1038
      %v1040 = vand.u32 %v1039, 4294901760
      %1041 = vmatmul.mubr.f32.gmra.mxu0 %v1040
      %v1042 = vpop.f32.mrf.mxu0
      %v1043 = vadd.f32 %v853, %v1042
      %v1044 = vpop.f32.mrf.mxu0
      %1045 = vmatprep.mubr.f32.mxu0 0.0
      %v1046 = vand.u32 %v298, 4294901760
      %v1047 = vsub.f32 %v298, %v1046
      %v1048 = vand.u32 %v1047, 4294901760
      %1049 = vmatmul.mubr.f32.gmra.mxu0 %v1048
      %v1050 = vpop.f32.mrf.mxu0
      %v1051 = vadd.f32 %v860, %v1050
      %v1052 = vpop.f32.mrf.mxu0
      %1053 = vmatprep.mubr.f32.mxu0 0.0
      %v1054 = vand.u32 %v301, 4294901760
      %v1055 = vsub.f32 %v301, %v1054
      %v1056 = vand.u32 %v1055, 4294901760
      %1057 = vmatmul.mubr.f32.gmra.mxu0 %v1056
      %v1058 = vpop.f32.mrf.mxu0
      %v1059 = vadd.f32 %v867, %v1058
      %v1060 = vpop.f32.mrf.mxu0
      %1061 = vmatprep.mubr.f32.mxu0 0.0
      %v1062 = vand.u32 %v304, 4294901760
      %v1063 = vsub.f32 %v304, %v1062
      %v1064 = vand.u32 %v1063, 4294901760
      %1065 = vmatmul.mubr.f32.gmra.mxu0 %v1064
      %v1066 = vpop.f32.mrf.mxu0
      %v1067 = vadd.f32 %v874, %v1066
      %v1068 = vpop.f32.mrf.mxu0
      %1069 = vmatprep.mubr.f32.mxu0 0.0
      %v1070 = vand.u32 %v307, 4294901760
      %v1071 = vsub.f32 %v307, %v1070
      %v1072 = vand.u32 %v1071, 4294901760
      %1073 = vmatmul.mubr.f32.gmra.mxu0 %v1072
      %v1074 = vpop.f32.mrf.mxu0
      %v1075 = vadd.f32 %v881, %v1074
      %v1076 = vpop.f32.mrf.mxu0
      %1077 = vmatprep.mubr.f32.mxu0 0.0
      %v1078 = vand.u32 %v310, 4294901760
      %v1079 = vsub.f32 %v310, %v1078
      %v1080 = vand.u32 %v1079, 4294901760
      %1081 = vmatmul.mubr.f32.gmra.mxu0 %v1080
      %v1082 = vpop.f32.mrf.mxu0
      %v1083 = vadd.f32 %v888, %v1082
      %v1084 = vpop.f32.mrf.mxu0
      %1085 = vdwg.mxu0
      %1086 = vmatprep.subr.mxu0 0.0
      %1087 = vmatpush1.msra.mxu0 0.0
      %1088 = vmatprep.subr.mxu0 0.0
      %1089 = vmatpush1.msra.mxu0 0.0
      %1090 = vmatprep.subr.mxu0 0.0
      %1091 = vmatpush1.msra.mxu0 0.0
      %1092 = vmatprep.subr.mxu0 0.0
      %1093 = vmatpush1.msra.mxu0 0.0
      %1094 = vmatprep.subr.mxu0 0.0
      %1095 = vmatpush1.msra.mxu0 0.0
      %1096 = vmatprep.subr.mxu0 0.0
      %1097 = vmatpush1.msra.mxu0 0.0
      %1098 = vmatprep.subr.mxu0 0.0
      %1099 = vmatpush1.msra.mxu0 0.0
      %1100 = vmatprep.subr.mxu0 0.0
      %1101 = vmatpush1.msra.mxu0 0.0
      %1102 = vmatprep.subr.mxu0 0.0
      %1103 = vmatpush1.msra.mxu0 0.0
      %1104 = vmatprep.subr.mxu0 0.0
      %1105 = vmatpush1.msra.mxu0 0.0
      %1106 = vmatprep.subr.mxu0 0.0
      %1107 = vmatpush1.msra.mxu0 0.0
      %1108 = vmatprep.subr.mxu0 0.0
      %1109 = vmatpush1.msra.mxu0 0.0
      %1110 = vmatprep.subr.mxu0 0.0
      %1111 = vmatpush1.msra.mxu0 0.0
      %1112 = vmatprep.subr.mxu0 0.0
      %1113 = vmatpush1.msra.mxu0 0.0
      %1114 = vmatprep.subr.mxu0 0.0
      %v1115 = vand.u32 %v262, 4294901760
      %v1116 = vsub.f32 %v262, %v1115
      %v1117 = vand.u32 %v1116, 4294901760
      %1118 = vmatpush1.msra.mxu0 %v1117
      %1119 = vmatprep.subr.mxu0 0.0
      %v1120 = vand.u32 %v261, 4294901760
      %v1121 = vsub.f32 %v261, %v1120
      %v1122 = vand.u32 %v1121, 4294901760
      %1123 = vmatpush1.msra.mxu0 %v1122
      %1124 = vmatprep.subr.mxu0 0.0
      %1125 = vmatpush2.msra.mxu0 0.0
      %1126 = vmatprep.subr.mxu0 0.0
      %1127 = vmatpush2.msra.mxu0 0.0
      %1128 = vmatprep.subr.mxu0 0.0
      %1129 = vmatpush2.msra.mxu0 0.0
      %1130 = vmatprep.subr.mxu0 0.0
      %1131 = vmatpush2.msra.mxu0 0.0
      %1132 = vmatprep.subr.mxu0 0.0
      %1133 = vmatpush2.msra.mxu0 0.0
      %1134 = vmatprep.subr.mxu0 0.0
      %1135 = vmatpush2.msra.mxu0 0.0
      %1136 = vmatprep.subr.mxu0 0.0
      %1137 = vmatpush2.msra.mxu0 0.0
      %1138 = vmatprep.subr.mxu0 0.0
      %1139 = vmatpush2.msra.mxu0 0.0
      %1140 = vmatprep.subr.mxu0 0.0
      %1141 = vmatpush2.msra.mxu0 0.0
      %1142 = vmatprep.subr.mxu0 0.0
      %1143 = vmatpush2.msra.mxu0 0.0
      %1144 = vmatprep.subr.mxu0 0.0
      %1145 = vmatpush2.msra.mxu0 0.0
      %1146 = vmatprep.subr.mxu0 0.0
      %1147 = vmatpush2.msra.mxu0 0.0
      %1148 = vmatprep.subr.mxu0 0.0
      %1149 = vmatpush2.msra.mxu0 0.0
      %1150 = vmatprep.subr.mxu0 0.0
      %1151 = vmatpush2.msra.mxu0 0.0
      %1152 = vmatprep.subr.mxu0 0.0
      %1153 = vmatpush2.msra.mxu0 0.0
      %1154 = vmatprep.subr.mxu0 0.0
      %1155 = vmatpush2.msra.mxu0 0.0
      %1156 = vmatprep.mubr.f32.mxu0 0.0
      %v1157 = vand.u32 %v265, 4294901760
      %1158 = vmatmul.mubr.f32.gmra.mxu0 %v1157
      %v1159 = vpop.f32.mrf.mxu0
      %v1160 = vadd.f32 %v963, %v1159
      %v1161 = vpop.f32.mrf.mxu0
      %1162 = vmatprep.mubr.f32.mxu0 0.0
      %v1163 = vand.u32 %v268, 4294901760
      %1164 = vmatmul.mubr.f32.gmra.mxu0 %v1163
      %v1165 = vpop.f32.mrf.mxu0
      %v1166 = vadd.f32 %v971, %v1165
      %v1167 = vpop.f32.mrf.mxu0
      %1168 = vmatprep.mubr.f32.mxu0 0.0
      %v1169 = vand.u32 %v271, 4294901760
      %1170 = vmatmul.mubr.f32.gmra.mxu0 %v1169
      %v1171 = vpop.f32.mrf.mxu0
      %v1172 = vadd.f32 %v979, %v1171
      %v1173 = vpop.f32.mrf.mxu0
      %1174 = vmatprep.mubr.f32.mxu0 0.0
      %v1175 = vand.u32 %v274, 4294901760
      %1176 = vmatmul.mubr.f32.gmra.mxu0 %v1175
      %v1177 = vpop.f32.mrf.mxu0
      %v1178 = vadd.f32 %v987, %v1177
      %v1179 = vpop.f32.mrf.mxu0
      %1180 = vmatprep.mubr.f32.mxu0 0.0
      %v1181 = vand.u32 %v277, 4294901760
      %1182 = vmatmul.mubr.f32.gmra.mxu0 %v1181
      %v1183 = vpop.f32.mrf.mxu0
      %v1184 = vadd.f32 %v995, %v1183
      %v1185 = vpop.f32.mrf.mxu0
      %1186 = vmatprep.mubr.f32.mxu0 0.0
      %v1187 = vand.u32 %v280, 4294901760
      %1188 = vmatmul.mubr.f32.gmra.mxu0 %v1187
      %v1189 = vpop.f32.mrf.mxu0
      %v1190 = vadd.f32 %v1003, %v1189
      %v1191 = vpop.f32.mrf.mxu0
      %1192 = vmatprep.mubr.f32.mxu0 0.0
      %v1193 = vand.u32 %v283, 4294901760
      %1194 = vmatmul.mubr.f32.gmra.mxu0 %v1193
      %v1195 = vpop.f32.mrf.mxu0
      %v1196 = vadd.f32 %v1011, %v1195
      %v1197 = vpop.f32.mrf.mxu0
      %1198 = vmatprep.mubr.f32.mxu0 0.0
      %v1199 = vand.u32 %v286, 4294901760
      %1200 = vmatmul.mubr.f32.gmra.mxu0 %v1199
      %v1201 = vpop.f32.mrf.mxu0
      %v1202 = vadd.f32 %v1019, %v1201
      %v1203 = vpop.f32.mrf.mxu0
      %1204 = vmatprep.mubr.f32.mxu0 0.0
      %v1205 = vand.u32 %v289, 4294901760
      %1206 = vmatmul.mubr.f32.gmra.mxu0 %v1205
      %v1207 = vpop.f32.mrf.mxu0
      %v1208 = vadd.f32 %v1027, %v1207
      %v1209 = vpop.f32.mrf.mxu0
      %1210 = vmatprep.mubr.f32.mxu0 0.0
      %v1211 = vand.u32 %v292, 4294901760
      %1212 = vmatmul.mubr.f32.gmra.mxu0 %v1211
      %v1213 = vpop.f32.mrf.mxu0
      %v1214 = vadd.f32 %v1035, %v1213
      %v1215 = vpop.f32.mrf.mxu0
      %1216 = vmatprep.mubr.f32.mxu0 0.0
      %v1217 = vand.u32 %v295, 4294901760
      %1218 = vmatmul.mubr.f32.gmra.mxu0 %v1217
      %v1219 = vpop.f32.mrf.mxu0
      %v1220 = vadd.f32 %v1043, %v1219
      %v1221 = vpop.f32.mrf.mxu0
      %1222 = vmatprep.mubr.f32.mxu0 0.0
      %v1223 = vand.u32 %v298, 4294901760
      %1224 = vmatmul.mubr.f32.gmra.mxu0 %v1223
      %v1225 = vpop.f32.mrf.mxu0
      %v1226 = vadd.f32 %v1051, %v1225
      %v1227 = vpop.f32.mrf.mxu0
      %1228 = vmatprep.mubr.f32.mxu0 0.0
      %v1229 = vand.u32 %v301, 4294901760
      %1230 = vmatmul.mubr.f32.gmra.mxu0 %v1229
      %v1231 = vpop.f32.mrf.mxu0
      %v1232 = vadd.f32 %v1059, %v1231
      %v1233 = vpop.f32.mrf.mxu0
      %1234 = vmatprep.mubr.f32.mxu0 0.0
      %v1235 = vand.u32 %v304, 4294901760
      %1236 = vmatmul.mubr.f32.gmra.mxu0 %v1235
      %v1237 = vpop.f32.mrf.mxu0
      %v1238 = vadd.f32 %v1067, %v1237
      %v1239 = vpop.f32.mrf.mxu0
      %1240 = vmatprep.mubr.f32.mxu0 0.0
      %v1241 = vand.u32 %v307, 4294901760
      %1242 = vmatmul.mubr.f32.gmra.mxu0 %v1241
      %v1243 = vpop.f32.mrf.mxu0
      %v1244 = vadd.f32 %v1075, %v1243
      %v1245 = vpop.f32.mrf.mxu0
      %1246 = vmatprep.mubr.f32.mxu0 0.0
      %v1247 = vand.u32 %v310, 4294901760
      %1248 = vmatmul.mubr.f32.gmra.mxu0 %v1247
      %v1249 = vpop.f32.mrf.mxu0
      %v1250 = vadd.f32 %v1083, %v1249
      %v1251 = vpop.f32.mrf.mxu0
      %1252 = vdwg.mxu0
      %1253 = vmatprep.subr.mxu0 0.0
      %1254 = vmatpush1.msra.mxu0 0.0
      %1255 = vmatprep.subr.mxu0 0.0
      %1256 = vmatpush1.msra.mxu0 0.0
      %1257 = vmatprep.subr.mxu0 0.0
      %1258 = vmatpush1.msra.mxu0 0.0
      %1259 = vmatprep.subr.mxu0 0.0
      %1260 = vmatpush1.msra.mxu0 0.0
      %1261 = vmatprep.subr.mxu0 0.0
      %1262 = vmatpush1.msra.mxu0 0.0
      %1263 = vmatprep.subr.mxu0 0.0
      %1264 = vmatpush1.msra.mxu0 0.0
      %1265 = vmatprep.subr.mxu0 0.0
      %1266 = vmatpush1.msra.mxu0 0.0
      %1267 = vmatprep.subr.mxu0 0.0
      %1268 = vmatpush1.msra.mxu0 0.0
      %1269 = vmatprep.subr.mxu0 0.0
      %1270 = vmatpush1.msra.mxu0 0.0
      %1271 = vmatprep.subr.mxu0 0.0
      %1272 = vmatpush1.msra.mxu0 0.0
      %1273 = vmatprep.subr.mxu0 0.0
      %1274 = vmatpush1.msra.mxu0 0.0
      %1275 = vmatprep.subr.mxu0 0.0
      %1276 = vmatpush1.msra.mxu0 0.0
      %1277 = vmatprep.subr.mxu0 0.0
      %1278 = vmatpush1.msra.mxu0 0.0
      %1279 = vmatprep.subr.mxu0 0.0
      %1280 = vmatpush1.msra.mxu0 0.0
      %1281 = vmatprep.subr.mxu0 0.0
      %v1282 = vand.u32 %v262, 4294901760
      %1283 = vmatpush1.msra.mxu0 %v1282
      %1284 = vmatprep.subr.mxu0 0.0
      %v1285 = vand.u32 %v261, 4294901760
      %1286 = vmatpush1.msra.mxu0 %v1285
      %1287 = vmatprep.subr.mxu0 0.0
      %1288 = vmatpush2.msra.mxu0 0.0
      %1289 = vmatprep.subr.mxu0 0.0
      %1290 = vmatpush2.msra.mxu0 0.0
      %1291 = vmatprep.subr.mxu0 0.0
      %1292 = vmatpush2.msra.mxu0 0.0
      %1293 = vmatprep.subr.mxu0 0.0
      %1294 = vmatpush2.msra.mxu0 0.0
      %1295 = vmatprep.subr.mxu0 0.0
      %1296 = vmatpush2.msra.mxu0 0.0
      %1297 = vmatprep.subr.mxu0 0.0
      %1298 = vmatpush2.msra.mxu0 0.0
      %1299 = vmatprep.subr.mxu0 0.0
      %1300 = vmatpush2.msra.mxu0 0.0
      %1301 = vmatprep.subr.mxu0 0.0
      %1302 = vmatpush2.msra.mxu0 0.0
      %1303 = vmatprep.subr.mxu0 0.0
      %1304 = vmatpush2.msra.mxu0 0.0
      %1305 = vmatprep.subr.mxu0 0.0
      %1306 = vmatpush2.msra.mxu0 0.0
      %1307 = vmatprep.subr.mxu0 0.0
      %1308 = vmatpush2.msra.mxu0 0.0
      %1309 = vmatprep.subr.mxu0 0.0
      %1310 = vmatpush2.msra.mxu0 0.0
      %1311 = vmatprep.subr.mxu0 0.0
      %1312 = vmatpush2.msra.mxu0 0.0
      %1313 = vmatprep.subr.mxu0 0.0
      %1314 = vmatpush2.msra.mxu0 0.0
      %1315 = vmatprep.subr.mxu0 0.0
      %1316 = vmatpush2.msra.mxu0 0.0
      %1317 = vmatprep.subr.mxu0 0.0
      %1318 = vmatpush2.msra.mxu0 0.0
      %1319 = vmatprep.mubr.f32.mxu0 0.0
      %v1320 = vand.u32 %v265, 4294901760
      %1321 = vmatmul.mubr.f32.gmra.mxu0 %v1320
      %v1322 = vpop.f32.mrf.mxu0
      %v1323 = vadd.f32 %v1160, %v1322
      %v1324 = vpop.f32.mrf.mxu0
      %1325 = vmatprep.mubr.f32.mxu0 0.0
      %v1326 = vand.u32 %v268, 4294901760
      %1327 = vmatmul.mubr.f32.gmra.mxu0 %v1326
      %v1328 = vpop.f32.mrf.mxu0
      %v1329 = vadd.f32 %v1166, %v1328
      %v1330 = vpop.f32.mrf.mxu0
      %1331 = vmatprep.mubr.f32.mxu0 0.0
      %v1332 = vand.u32 %v271, 4294901760
      %1333 = vmatmul.mubr.f32.gmra.mxu0 %v1332
      %v1334 = vpop.f32.mrf.mxu0
      %v1335 = vadd.f32 %v1172, %v1334
      %v1336 = vpop.f32.mrf.mxu0
      %1337 = vmatprep.mubr.f32.mxu0 0.0
      %v1338 = vand.u32 %v274, 4294901760
      %1339 = vmatmul.mubr.f32.gmra.mxu0 %v1338
      %v1340 = vpop.f32.mrf.mxu0
      %v1341 = vadd.f32 %v1178, %v1340
      %v1342 = vpop.f32.mrf.mxu0
      %1343 = vmatprep.mubr.f32.mxu0 0.0
      %v1344 = vand.u32 %v277, 4294901760
      %1345 = vmatmul.mubr.f32.gmra.mxu0 %v1344
      %v1346 = vpop.f32.mrf.mxu0
      %v1347 = vadd.f32 %v1184, %v1346
      %v1348 = vpop.f32.mrf.mxu0
      %1349 = vmatprep.mubr.f32.mxu0 0.0
      %v1350 = vand.u32 %v280, 4294901760
      %1351 = vmatmul.mubr.f32.gmra.mxu0 %v1350
      %v1352 = vpop.f32.mrf.mxu0
      %v1353 = vadd.f32 %v1190, %v1352
      %v1354 = vpop.f32.mrf.mxu0
      %1355 = vmatprep.mubr.f32.mxu0 0.0
      %v1356 = vand.u32 %v283, 4294901760
      %1357 = vmatmul.mubr.f32.gmra.mxu0 %v1356
      %v1358 = vpop.f32.mrf.mxu0
      %v1359 = vadd.f32 %v1196, %v1358
      %v1360 = vpop.f32.mrf.mxu0
      %1361 = vmatprep.mubr.f32.mxu0 0.0
      %v1362 = vand.u32 %v286, 4294901760
      %1363 = vmatmul.mubr.f32.gmra.mxu0 %v1362
      %v1364 = vpop.f32.mrf.mxu0
      %v1365 = vadd.f32 %v1202, %v1364
      %v1366 = vpop.f32.mrf.mxu0
      %1367 = vmatprep.mubr.f32.mxu0 0.0
      %v1368 = vand.u32 %v289, 4294901760
      %1369 = vmatmul.mubr.f32.gmra.mxu0 %v1368
      %v1370 = vpop.f32.mrf.mxu0
      %v1371 = vadd.f32 %v1208, %v1370
      %v1372 = vpop.f32.mrf.mxu0
      %1373 = vmatprep.mubr.f32.mxu0 0.0
      %v1374 = vand.u32 %v292, 4294901760
      %1375 = vmatmul.mubr.f32.gmra.mxu0 %v1374
      %v1376 = vpop.f32.mrf.mxu0
      %v1377 = vadd.f32 %v1214, %v1376
      %v1378 = vpop.f32.mrf.mxu0
      %1379 = vmatprep.mubr.f32.mxu0 0.0
      %v1380 = vand.u32 %v295, 4294901760
      %1381 = vmatmul.mubr.f32.gmra.mxu0 %v1380
      %v1382 = vpop.f32.mrf.mxu0
      %v1383 = vadd.f32 %v1220, %v1382
      %v1384 = vpop.f32.mrf.mxu0
      %1385 = vmatprep.mubr.f32.mxu0 0.0
      %v1386 = vand.u32 %v298, 4294901760
      %1387 = vmatmul.mubr.f32.gmra.mxu0 %v1386
      %v1388 = vpop.f32.mrf.mxu0
      %v1389 = vadd.f32 %v1226, %v1388
      %v1390 = vpop.f32.mrf.mxu0
      %1391 = vmatprep.mubr.f32.mxu0 0.0
      %v1392 = vand.u32 %v301, 4294901760
      %1393 = vmatmul.mubr.f32.gmra.mxu0 %v1392
      %v1394 = vpop.f32.mrf.mxu0
      %v1395 = vadd.f32 %v1232, %v1394
      %v1396 = vpop.f32.mrf.mxu0
      %1397 = vmatprep.mubr.f32.mxu0 0.0
      %v1398 = vand.u32 %v304, 4294901760
      %1399 = vmatmul.mubr.f32.gmra.mxu0 %v1398
      %v1400 = vpop.f32.mrf.mxu0
      %v1401 = vadd.f32 %v1238, %v1400
      %v1402 = vpop.f32.mrf.mxu0
      %1403 = vmatprep.mubr.f32.mxu0 0.0
      %v1404 = vand.u32 %v307, 4294901760
      %1405 = vmatmul.mubr.f32.gmra.mxu0 %v1404
      %v1406 = vpop.f32.mrf.mxu0
      %v1407 = vadd.f32 %v1244, %v1406
      %v1408 = vpop.f32.mrf.mxu0
      %1409 = vmatprep.mubr.f32.mxu0 0.0
      %v1410 = vand.u32 %v310, 4294901760
      %1411 = vmatmul.mubr.f32.gmra.mxu0 %v1410
      %v1412 = vpop.f32.mrf.mxu0
      %v1413 = vadd.f32 %v1250, %v1412
      %v1414 = vpop.f32.mrf.mxu0
      %1415 = vdwg.mxu0
      %vm1416 = vcmask 261120
      %1417 = vst.msk [vmem:[%s145] sm:$0xff] %vm1416, %v1323
      %1418 = vst.msk [vmem:[%s145 + $0x8] sm:$0xff] %vm1416, %v1329
      %1419 = vst.msk [vmem:[%s145 + $0x10] sm:$0xff] %vm1416, %v1335
      %1420 = vst.msk [vmem:[%s145 + $0x18] sm:$0xff] %vm1416, %v1341
      %1421 = vst.msk [vmem:[%s145 + $0x20] sm:$0xff] %vm1416, %v1347
      %1422 = vst.msk [vmem:[%s145 + $0x28] sm:$0xff] %vm1416, %v1353
      %1423 = vst.msk [vmem:[%s145 + $0x30] sm:$0xff] %vm1416, %v1359
      %1424 = vst.msk [vmem:[%s145 + $0x38] sm:$0xff] %vm1416, %v1365
      %1425 = vst.msk [vmem:[%s145 + $0x40] sm:$0xff] %vm1416, %v1371
      %1426 = vst.msk [vmem:[%s145 + $0x48] sm:$0xff] %vm1416, %v1377
      %1427 = vst.msk [vmem:[%s145 + $0x50] sm:$0xff] %vm1416, %v1383
      %1428 = vst.msk [vmem:[%s145 + $0x58] sm:$0xff] %vm1416, %v1389
      %1429 = vst.msk [vmem:[%s145 + $0x60] sm:$0xff] %vm1416, %v1395
      %1430 = vst.msk [vmem:[%s145 + $0x68] sm:$0xff] %vm1416, %v1401
      %1431 = vst.msk [vmem:[%s145 + $0x70] sm:$0xff] %vm1416, %v1407
      %1432 = vst.msk [vmem:[%s145 + $0x78] sm:$0xff] %vm1416, %v1413
      %s1433 = smul.u32 16, %s13
      %p1434 = scmp.lt.s32.totalorder %s1433, 31
      %s1435 = scalar_select %p1434, %s1433, 31
      %s1436 = smul.addr %s1435, 8
      %s1437 = scalar_lea.vmem %s2, %s1436
      // Predicated region
      $region29: #{tpu_custom_call.1} parent=27 // pred_check
        %p1438 = pneg %p78
      $region30: #{tpu_custom_call.1} parent=27 // pred_check_branch
        %1440 = sbr.rel (%p1438) target = $region32
      $region31: #{tpu_custom_call.1} parent=27 // pred_region
        %s1441 = smul.u32 16, %s13
      $region32: #{tpu_custom_call.1} parent=27 // pred_fallthru
        _
    $region28: #{tpu_custom_call.1} parent=5 // pred_fallthru
      _
    %p1442 = scmp.le.s32.totalorder 2, %s8
    // Predicated region
    $region33: #{tpu_custom_call.1} parent=5 // pred_check
      %p1443 = pneg %p1442
    $region34: #{tpu_custom_call.1} parent=5 // pred_check_branch
      %1445 = sbr.rel (%p1443) target = $region36
    $region35: #{tpu_custom_call.1} parent=5 // pred_region
      %s1446 = ssub.s32 %s8, 2
      // Predicated region
      $region37: #{tpu_custom_call.1} parent=35 // pred_check
        %p1447 = pneg %p84
      $region38: #{tpu_custom_call.1} parent=35 // pred_check_branch
        %1449 = sbr.rel (%p1447) target = $region40
      $region39: #{tpu_custom_call.1} parent=35 // pred_region
        %s1450 = smul.u32 16, %s14
        %p1451 = scmp.lt.s32.totalorder %s1450, 31
        %s1452 = scalar_select %p1451, %s1450, 31
        %s1453 = smul.addr %s1452, 8
        %s1454 = scalar_lea.vmem %s2, %s1453
      $region40: #{tpu_custom_call.1} parent=35 // pred_fallthru
        _
    $region36: #{tpu_custom_call.1} parent=5 // pred_fallthru
      _
  $region6: #{tpu_custom_call.1} parent=0 // loop_footer
    %s12 = sadd.s32 1, %s8
  $region7: #{tpu_custom_call.1} parent=0 // loop_footer_branch
    %7 = sbr.rel target = $region3
  $region8: #{tpu_custom_call.1} parent=0 // loop_exit
    _

</llo_original>
